<compile_context>
chip_gen: v5e
topology: v5e:2x2
jax: 0.10.0
libtpu: 0.0.40
codegen_flags: <defaults>
</compile_context>

<pallas_src>
import functools

import jax
import jax.numpy as jnp
from jax import lax
from jax.experimental import pallas as pl
from jax.experimental.pallas import tpu as pltpu


def _round_up(x, m):
    return ((x + m - 1) // m) * m


def criticv_kernel(x_ref, w1_ref, b1_ref, w2_ref, b2_ref, w3_ref, b3_ref, o_ref):
    # x_ref: (tb, D) -- natural layout: batch on sublanes, features on lanes.
    x = x_ref[...]

    # Layer 1: contract over D; batch lands on the lane axis of the result.
    #   (H1, D) x (tb, D)^T -> (H1, tb); bias (H1, 1) broadcasts over lanes.
    h1 = lax.dot_general(
        w1_ref[...], x,
        dimension_numbers=(((1,), (1,)), ((), ())),
        preferred_element_type=jnp.float32,
    ) + b1_ref[...]
    h1 = jnp.maximum(h1, 0.0)

    # Layer 2: (H2, H1) @ (H1, tb) -> (H2, tb).
    h2 = jnp.dot(w2_ref[...], h1, preferred_element_type=jnp.float32) + b2_ref[...]
    h2 = jnp.maximum(h2, 0.0)

    # Layer 3 (out_features = 1): VPU multiply + sublane (XLU) reduction.
    # w3_ref is an (H2, 1) column, b3_ref is (1, 1).  Output is lane-dense.
    v = jnp.sum(h2 * w3_ref[...], axis=0, keepdims=True) + b3_ref[...]   # (1, tb)
    o_ref[...] = v.astype(o_ref.dtype)


@functools.partial(jax.jit, static_argnames=("batch_tile",))
def criticv_forward(states, params, batch_tile=8192):
    """states: (B, D) float32. Returns (B,) float32, matching torch.squeeze(-1).

    params: (w1, b1, w2, b2, w3, b3) with PyTorch-native weight layout
      w1: (H1, D), b1: (H1, 1), w2: (H2, H1), b2: (H2, 1), w3: (H2, 1), b3: (1, 1)
    """
    w1, b1, w2, b2, w3, b3 = params
    B, D = states.shape
    H1 = w1.shape[0]
    H2 = w2.shape[0]

    # Batch tile selection (no host-side padding of the batch):
    #   * B <= batch_tile: single full-extent block (always a legal block shape).
    #   * otherwise: a lane/sublane-aligned tile; the last grid block may be
    #     partial -- Pallas clamps the input DMA and masks the output store,
    #     and the garbage lanes never feed a cross-lane (batch) reduction.
    if B <= batch_tile:
        tb = B
    else:
        tb = _round_up(batch_tile, 128)
    grid = (pl.cdiv(B, tb),)

    weight_bytes = 4 * (H1 * D + H1 + H2 * H1 + H2 + H2 + 1)
    cost = pl.CostEstimate(
        flops=2 * B * (D * H1 + H1 * H2 + H2),
        transcendentals=0,
        bytes_accessed=B * D * 4 + B * 4 + weight_bytes,
    )

    out = pl.pallas_call(
        criticv_kernel,
        out_shape=jax.ShapeDtypeStruct((1, B), jnp.float32),
        grid_spec=pltpu.PrefetchScalarGridSpec(
            num_scalar_prefetch=0,
            grid=grid,
            in_specs=[
                # states: natural (B, D) layout, contiguous (tb, D) slab per step.
                pl.BlockSpec((tb, D), lambda i: (i, 0)),
                # weights / biases: constant index_map -> VMEM-resident.
                pl.BlockSpec((H1, D), lambda i: (0, 0)),
                pl.BlockSpec((H1, 1), lambda i: (0, 0)),
                pl.BlockSpec((H2, H1), lambda i: (0, 0)),
                pl.BlockSpec((H2, 1), lambda i: (0, 0)),
                pl.BlockSpec((H2, 1), lambda i: (0, 0)),
                pl.BlockSpec((1, 1), lambda i: (0, 0)),
            ],
            # Lane-dense output slab: batch on the 128-lane axis.
            out_specs=pl.BlockSpec((1, tb), lambda i: (0, i)),
        ),
        compiler_params=pltpu.CompilerParams(
            dimension_semantics=("parallel",),
        ),
        cost_estimate=cost,
    )(states, w1, b1, w2, b2, w3, b3)

    return out[0]   # (B,)


def init_params(key, state_dim, critic_units=(32, 32)):
    """Deterministic init mimicking nn.Linear's U(-1/sqrt(fan_in), 1/sqrt(fan_in)).
    Weights stored PyTorch-style (out, in); biases stored as (out, 1) columns."""
    dims = [state_dim, critic_units[0], critic_units[1], 1]
    params = []
    keys = jax.random.split(key, 2 * (len(dims) - 1))
    for i in range(len(dims) - 1):
        fan_in, fan_out = dims[i], dims[i + 1]
        bound = 1.0 / jnp.sqrt(jnp.float32(fan_in))
        w = jax.random.uniform(keys[2 * i], (fan_out, fan_in),
                               minval=-bound, maxval=bound, dtype=jnp.float32)
        b = jax.random.uniform(keys[2 * i + 1], (fan_out, 1),
                               minval=-bound, maxval=bound, dtype=jnp.float32)
        params += [w, b]
    # w3 arrives as (1, H2); store it as an (H2, 1) column for the in-kernel
    # VPU reduce.  b3 stays (1, 1).
    w1, b1, w2, b2, w3, b3 = params
    return (w1, b1, w2, b2, w3.T, b3)


def _reference(states, params):
    """Pure-JAX reference of the same math (PyTorch Linear semantics)."""
    w1, b1, w2, b2, w3, b3 = params
    h1 = jnp.maximum(states @ w1.T + b1.T, 0.0)
    h2 = jnp.maximum(h1 @ w2.T + b2.T, 0.0)
    return jnp.squeeze(h2 @ w3 + b3.T, -1)   # w3 is an (H2, 1) column here


if __name__ == "__main__":
    key = jax.random.PRNGKey(0)
    k_x, k_p = jax.random.split(key)

    B, STATE_DIM = 8, 16
    CRITIC_UNITS = (32, 32)

    states = jax.random.normal(k_x, (B, STATE_DIM), dtype=jnp.float32)
    params = init_params(k_p, STATE_DIM, CRITIC_UNITS)

    values = criticv_forward(states, params)
    jax.block_until_ready(values)
    assert values.shape == (B,), values.shape
    assert jnp.allclose(values, _reference(states, params), atol=1e-5, rtol=1e-5)

    # Exercise the multi-block path with a partial last block (grid > 1,
    # B % tb != 0) to validate the no-pad boundary handling.
    B2 = 300
    states2 = jax.random.normal(k_x, (B2, STATE_DIM), dtype=jnp.float32)
    values2 = criticv_forward(states2, params, batch_tile=128)
    jax.block_until_ready(values2)
    assert values2.shape == (B2,), values2.shape
    assert jnp.allclose(values2, _reference(states2, params), atol=1e-5, rtol=1e-5)

    print("KERNEL_OK")
</pallas_src>

<mosaic_0001>
module attributes {stable_mosaic.version = 11 : i64} {
  func.func @criticv_kernel(%arg0: i32, %arg1: memref<8x16xf32, #tpu.memory_space<vmem>>, %arg2: memref<32x16xf32, #tpu.memory_space<vmem>>, %arg3: memref<32x1xf32, #tpu.memory_space<vmem>>, %arg4: memref<32x32xf32, #tpu.memory_space<vmem>>, %arg5: memref<32x1xf32, #tpu.memory_space<vmem>>, %arg6: memref<32x1xf32, #tpu.memory_space<vmem>>, %arg7: memref<1x1xf32, #tpu.memory_space<vmem>>, %arg8: memref<1x8xf32, #tpu.memory_space<vmem>>) attributes {dimension_semantics = [#tpu.dimension_semantics<parallel>], iteration_bounds = array<i64: 1>, scalar_prefetch = 0 : i64, scratch_operands = 0 : i64, tpu.core_type = #tpu.core_type<tc>, window_params = [{transform_indices = @transform_0, window_bounds = array<i64: 8, 16>}, {pipeline_mode = #tpu.pipeline_mode<synchronous>, transform_indices = @transform_1, window_bounds = array<i64: 32, 16>}, {pipeline_mode = #tpu.pipeline_mode<synchronous>, transform_indices = @transform_2, window_bounds = array<i64: 32, 1>}, {pipeline_mode = #tpu.pipeline_mode<synchronous>, transform_indices = @transform_3, window_bounds = array<i64: 32, 32>}, {pipeline_mode = #tpu.pipeline_mode<synchronous>, transform_indices = @transform_4, window_bounds = array<i64: 32, 1>}, {pipeline_mode = #tpu.pipeline_mode<synchronous>, transform_indices = @transform_5, window_bounds = array<i64: 32, 1>}, {pipeline_mode = #tpu.pipeline_mode<synchronous>, transform_indices = @transform_6, window_bounds = array<i64: 1, 1>}, {transform_indices = @transform_7, window_bounds = array<i64: 1, 8>}]} {
    %c0 = arith.constant 0 : index
    %c0_0 = arith.constant 0 : index
    %0 = vector.load %arg1[%c0, %c0_0] : memref<8x16xf32, #tpu.memory_space<vmem>>, vector<8x16xf32>
    %c0_1 = arith.constant 0 : index
    %c0_2 = arith.constant 0 : index
    %1 = vector.load %arg2[%c0_1, %c0_2] : memref<32x16xf32, #tpu.memory_space<vmem>>, vector<32x16xf32>
    %cst = arith.constant dense<0.000000e+00> : vector<32x8xf32>
    %2 = tpu.matmul %1, %0, %cst {dimension_numbers = #tpu.dot_dimension_numbers<[1], [1], [0], [0], [0, 0, 1, 0], [], []>} : vector<32x16xf32>, vector<8x16xf32>, vector<32x8xf32> -> vector<32x8xf32>
    %c0_3 = arith.constant 0 : index
    %c0_4 = arith.constant 0 : index
    %3 = vector.load %arg3[%c0_3, %c0_4] : memref<32x1xf32, #tpu.memory_space<vmem>>, vector<32x1xf32>
    %4 = vector.broadcast %3 : vector<32x1xf32> to vector<32x8xf32>
    %5 = arith.addf %2, %4 : vector<32x8xf32>
    %cst_5 = arith.constant 0.000000e+00 : f32
    %6 = vector.broadcast %cst_5 : f32 to vector<32x8xf32>
    %7 = arith.maximumf %5, %6 : vector<32x8xf32>
    %c0_6 = arith.constant 0 : index
    %c0_7 = arith.constant 0 : index
    %8 = vector.load %arg4[%c0_6, %c0_7] : memref<32x32xf32, #tpu.memory_space<vmem>>, vector<32x32xf32>
    %cst_8 = arith.constant dense<0.000000e+00> : vector<32x8xf32>
    %9 = tpu.matmul %8, %7, %cst_8 {dimension_numbers = #tpu.dot_dimension_numbers<[1], [0], [0], [1], [0, 0, 1, 1], [], []>} : vector<32x32xf32>, vector<32x8xf32>, vector<32x8xf32> -> vector<32x8xf32>
    %c0_9 = arith.constant 0 : index
    %c0_10 = arith.constant 0 : index
    %10 = vector.load %arg5[%c0_9, %c0_10] : memref<32x1xf32, #tpu.memory_space<vmem>>, vector<32x1xf32>
    %11 = vector.broadcast %10 : vector<32x1xf32> to vector<32x8xf32>
    %12 = arith.addf %9, %11 : vector<32x8xf32>
    %cst_11 = arith.constant 0.000000e+00 : f32
    %13 = vector.broadcast %cst_11 : f32 to vector<32x8xf32>
    %14 = arith.maximumf %12, %13 : vector<32x8xf32>
    %c0_12 = arith.constant 0 : index
    %c0_13 = arith.constant 0 : index
    %15 = vector.load %arg6[%c0_12, %c0_13] : memref<32x1xf32, #tpu.memory_space<vmem>>, vector<32x1xf32>
    %16 = vector.broadcast %15 : vector<32x1xf32> to vector<32x8xf32>
    %17 = arith.mulf %14, %16 : vector<32x8xf32>
    %cst_14 = arith.constant dense<0.000000e+00> : vector<8xf32>
    %18 = vector.multi_reduction <add>, %17, %cst_14 [0] : vector<32x8xf32> to vector<8xf32>
    %19 = vector.shape_cast %18 : vector<8xf32> to vector<1x8xf32>
    %c0_15 = arith.constant 0 : index
    %c0_16 = arith.constant 0 : index
    %20 = vector.load %arg7[%c0_15, %c0_16] : memref<1x1xf32, #tpu.memory_space<vmem>>, vector<1x1xf32>
    %21 = vector.broadcast %20 : vector<1x1xf32> to vector<1x8xf32>
    %22 = arith.addf %19, %21 : vector<1x8xf32>
    %c0_17 = arith.constant 0 : index
    %c0_18 = arith.constant 0 : index
    %23 = vector.load %arg8[%c0_17, %c0_18] : memref<1x8xf32, #tpu.memory_space<vmem>>, vector<1x8xf32>
    tpu.vector_store %arg8[%c0_17, %c0_18], %22 {strides = array<i32>} : memref<1x8xf32, #tpu.memory_space<vmem>>, vector<1x8xf32>,
    return
  }
  func.func @transform_0(%arg0: i32) -> (i32, i32) {
    %c0_i32 = arith.constant 0 : i32
    %c0_i32_0 = arith.constant 0 : i32
    return %arg0, %c0_i32 : i32, i32
  }
  func.func @transform_1(%arg0: i32) -> (i32, i32) {
    %c0_i32 = arith.constant 0 : i32
    %c0_i32_0 = arith.constant 0 : i32
    %c0_i32_1 = arith.constant 0 : i32
    return %c0_i32, %c0_i32_0 : i32, i32
  }
  func.func @transform_2(%arg0: i32) -> (i32, i32) {
    %c0_i32 = arith.constant 0 : i32
    %c0_i32_0 = arith.constant 0 : i32
    %c0_i32_1 = arith.constant 0 : i32
    return %c0_i32, %c0_i32_0 : i32, i32
  }
  func.func @transform_3(%arg0: i32) -> (i32, i32) {
    %c0_i32 = arith.constant 0 : i32
    %c0_i32_0 = arith.constant 0 : i32
    %c0_i32_1 = arith.constant 0 : i32
    return %c0_i32, %c0_i32_0 : i32, i32
  }
  func.func @transform_4(%arg0: i32) -> (i32, i32) {
    %c0_i32 = arith.constant 0 : i32
    %c0_i32_0 = arith.constant 0 : i32
    %c0_i32_1 = arith.constant 0 : i32
    return %c0_i32, %c0_i32_0 : i32, i32
  }
  func.func @transform_5(%arg0: i32) -> (i32, i32) {
    %c0_i32 = arith.constant 0 : i32
    %c0_i32_0 = arith.constant 0 : i32
    %c0_i32_1 = arith.constant 0 : i32
    return %c0_i32, %c0_i32_0 : i32, i32
  }
  func.func @transform_6(%arg0: i32) -> (i32, i32) {
    %c0_i32 = arith.constant 0 : i32
    %c0_i32_0 = arith.constant 0 : i32
    %c0_i32_1 = arith.constant 0 : i32
    return %c0_i32, %c0_i32_0 : i32, i32
  }
  func.func @transform_7(%arg0: i32) -> (i32, i32) {
    %c0_i32 = arith.constant 0 : i32
    %c0_i32_0 = arith.constant 0 : i32
    return %c0_i32, %arg0 : i32, i32
  }
}

</mosaic_0001>

<llo_original>
// kernel: criticv_forward.1
$region0: #{criticv_forward.1}
  #allocation0 [shape = 'u32[]', space=smem, size = 0x4, offset = 0x4, fixed_abs, tag = 'smem constant byte address 0x4 - core index']
  #allocation1 [shape = 'u32[72,128]{1,0:T(1,128)}', space=vmem, size = 0x9000, scoped, tag = 'internal scratch']
  #allocation2 [shape = 'f32[1,1]{1,0:T(1,128)S(1)}', space=vmem, size = 0x200, scoped, tag = 'scoped memory for criticv_forward.1']
  %s0 = inlined_call_operand.vmem [shape: f32[8,16], index: 0, kind: input, shape index: {}]
  %s1 = inlined_call_operand.vmem [shape: f32[32,16], index: 1, kind: input, shape index: {}]
  %s2 = inlined_call_operand.vmem [shape: f32[32,1], index: 2, kind: input, shape index: {}]
  %s3 = inlined_call_operand.vmem [shape: f32[32,32], index: 3, kind: input, shape index: {}]
  %s4 = inlined_call_operand.vmem [shape: f32[32,1], index: 4, kind: input, shape index: {}]
  %s5 = inlined_call_operand.vmem [shape: f32[32,1], index: 5, kind: input, shape index: {}]
  %s6 = inlined_call_operand.<no memory space> [shape: f32[1,1], index: 6, kind: input, shape index: {}]
  %s7 = inlined_call_operand.hbm [shape: f32[1,8], index: 7, kind: output, shape index: {}]
  %s8 = sld [smem:[#allocation0]]
  $region38: #{criticv_forward.1} parent=0
    _
  %s10 = ssub.s32 1, %s8
  %s11 = scalar_select 0, %s10, %s8
  %v12 = vstv %s6
  %13 = vst [vmem:[#allocation2] sm:$0x1] %v12
  $region1: #{criticv_forward.1} parent=0
    #allocation3 [shape = 'u8[512]{0}', space=vmem, size = 0x400, scoped, tag = 'output window, operand 0, single buffered']
    #allocation4 [shape = 's32[1]{0}', space=sflag, size = 0x4, scoped, tag = 'scoped memory for criticv_forward.1']
    %14 = vsyncpa [#allocation4], 0
    // Predicated region
    $region2: #{criticv_forward.1} parent=1 // pred_check
      _
    $region3: #{criticv_forward.1} parent=1 // pred_check_branch
      %16 = sbr.rel (0) target = $region5
    $region4: #{criticv_forward.1} parent=1 // pred_region
      _
    $region5: #{criticv_forward.1} parent=1 // pred_fallthru
      _
    // Predicated region
    $region6: #{criticv_forward.1} parent=1 // pred_check
      _
    $region7: #{criticv_forward.1} parent=1 // pred_check_branch
      %18 = sbr.rel (0) target = $region9
    $region8: #{criticv_forward.1} parent=1 // pred_region
      _
    $region9: #{criticv_forward.1} parent=1 // pred_fallthru
      _
    // Predicated region
    $region10: #{criticv_forward.1} parent=1 // pred_check
      _
    $region11: #{criticv_forward.1} parent=1 // pred_check_branch
      %20 = sbr.rel (0) target = $region13
    $region12: #{criticv_forward.1} parent=1 // pred_region
      _
    $region13: #{criticv_forward.1} parent=1 // pred_fallthru
      _
    // Predicated region
    $region14: #{criticv_forward.1} parent=1 // pred_check
      _
    $region15: #{criticv_forward.1} parent=1 // pred_check_branch
      %22 = sbr.rel (0) target = $region17
    $region16: #{criticv_forward.1} parent=1 // pred_region
      _
    $region17: #{criticv_forward.1} parent=1 // pred_fallthru
      _
    // Predicated region
    $region18: #{criticv_forward.1} parent=1 // pred_check
      _
    $region19: #{criticv_forward.1} parent=1 // pred_check_branch
      %24 = sbr.rel (0) target = $region21
    $region20: #{criticv_forward.1} parent=1 // pred_region
      _
    $region21: #{criticv_forward.1} parent=1 // pred_fallthru
      _
    // Predicated region
    $region22: #{criticv_forward.1} parent=1 // pred_check
      _
    $region23: #{criticv_forward.1} parent=1 // pred_check_branch
      %26 = sbr.rel (0) target = $region25
    $region24: #{criticv_forward.1} parent=1 // pred_region
      _
    $region25: #{criticv_forward.1} parent=1 // pred_fallthru
      _
    // Predicated region
    $region26: #{criticv_forward.1} parent=1 // pred_check
      _
    $region27: #{criticv_forward.1} parent=1 // pred_check_branch
      %28 = sbr.rel (0) target = $region29
    $region28: #{criticv_forward.1} parent=1 // pred_region
      _
    $region29: #{criticv_forward.1} parent=1 // pred_fallthru
      _
    %v29 = vld [vmem:[%s0] sm:$0xff]
    %v30 = vld [vmem:[%s1] sm:$0xff]
    %v31 = vld [vmem:[%s1 + $0x8] sm:$0xff]
    %v32 = vld [vmem:[%s1 + $0x10] sm:$0xff]
    %v33 = vld [vmem:[%s1 + $0x18] sm:$0xff]
    %v34 = vld [vmem:[%s2] sm:$0xff]
    %v35 = vld [vmem:[%s2 + $0x8] sm:$0xff]
    %v36 = vld [vmem:[%s2 + $0x10] sm:$0xff]
    %v37 = vld [vmem:[%s2 + $0x18] sm:$0xff]
    %39 = vset.pattern.permute.xlu0 0
    %40 = vperm.xlu0 %39, %v34
    %v41 = vpop.permute.xlu0 %40
    %44 = vset.pattern.permute.xlu0 0
    %45 = vperm.xlu0 %44, %v35
    %v46 = vpop.permute.xlu0 %45
    %49 = vset.pattern.permute.xlu0 0
    %50 = vperm.xlu0 %49, %v36
    %v51 = vpop.permute.xlu0 %50
    %54 = vset.pattern.permute.xlu0 0
    %55 = vperm.xlu0 %54, %v37
    %v56 = vpop.permute.xlu0 %55
    %vm58 = vcmask 130048
    %v60 = vsel %vm58, %v30, 0
    %v63 = vsel %vm58, %v31, 0
    %v66 = vsel %vm58, %v32, 0
    %v69 = vsel %vm58, %v33, 0
    %v72 = vsel %vm58, %v29, 0
    %74 = vmatpush.xpose.msra.mxu0 0.0
    %75 = vmatpush.xpose.msra.mxu0 0.0
    %76 = vmatpush.xpose.msra.mxu0 0.0
    %77 = vmatpush.xpose.msra.mxu0 0.0
    %78 = vmatpush.xpose.msra.mxu0 0.0
    %79 = vmatpush.xpose.msra.mxu0 0.0
    %80 = vmatpush.xpose.msra.mxu0 0.0
    %81 = vmatpush.xpose.msra.mxu0 0.0
    %82 = vmatpush.xpose.msra.mxu0 0.0
    %83 = vmatpush.xpose.msra.mxu0 0.0
    %84 = vmatpush.xpose.msra.mxu0 0.0
    %85 = vmatpush.xpose.msra.mxu0 0.0
    %86 = vmatpush.xpose.msra.mxu0 0.0
    %87 = vmatpush.xpose.msra.mxu0 0.0
    %88 = vmatpush.xpose.msra.mxu0 0.0
    %89 = vmatpush.xpose.msra.mxu0 %v72
    %90 = vmatmul.f32.gmra.mxu0 %v60
    %v91 = vpop.f32.mrf.mxu0
    %v92 = vadd.f32 %v41, %v91
    %93 = vmatmul.f32.gmra.mxu0 %v63
    %v94 = vpop.f32.mrf.mxu0
    %v95 = vadd.f32 %v46, %v94
    %96 = vmatmul.f32.gmra.mxu0 %v66
    %v97 = vpop.f32.mrf.mxu0
    %v98 = vadd.f32 %v51, %v97
    %99 = vmatmul.f32.gmra.mxu0 %v69
    %v100 = vpop.f32.mrf.mxu0
    %v101 = vadd.f32 %v56, %v100
    %102 = vdwg.mxu0
    %v103 = vmax.f32 %v92, 0.0
    %v104 = vmax.f32 %v95, 0.0
    %v105 = vmax.f32 %v98, 0.0
    %v106 = vmax.f32 %v101, 0.0
    %v107 = vld [vmem:[%s3] sm:$0xff]
    %v108 = vld [vmem:[%s3 + $0x8] sm:$0xff]
    %v109 = vld [vmem:[%s3 + $0x10] sm:$0xff]
    %v110 = vld [vmem:[%s3 + $0x18] sm:$0xff]
    %v111 = vld [vmem:[%s4] sm:$0xff]
    %v112 = vld [vmem:[%s4 + $0x8] sm:$0xff]
    %v113 = vld [vmem:[%s4 + $0x10] sm:$0xff]
    %v114 = vld [vmem:[%s4 + $0x18] sm:$0xff]
    %116 = vset.pattern.permute.xlu0 0
    %117 = vperm.xlu0 %116, %v111
    %v118 = vpop.permute.xlu0 %117
    %121 = vset.pattern.permute.xlu0 0
    %122 = vperm.xlu0 %121, %v112
    %v123 = vpop.permute.xlu0 %122
    %126 = vset.pattern.permute.xlu0 0
    %127 = vperm.xlu0 %126, %v113
    %v128 = vpop.permute.xlu0 %127
    %131 = vset.pattern.permute.xlu0 0
    %132 = vperm.xlu0 %131, %v114
    %v133 = vpop.permute.xlu0 %132
    %vm135 = vcmask 261120
    %v137 = vsel %vm135, %v107, 0
    %v140 = vsel %vm135, %v108, 0
    %v143 = vsel %vm135, %v109, 0
    %v146 = vsel %vm135, %v110, 0
    %148 = vmatpush.msra.mxu0 0.0
    %149 = vmatpush.msra.mxu0 0.0
    %150 = vmatpush.msra.mxu0 0.0
    %151 = vmatpush.msra.mxu0 0.0
    %152 = vmatpush.msra.mxu0 0.0
    %153 = vmatpush.msra.mxu0 0.0
    %154 = vmatpush.msra.mxu0 0.0
    %155 = vmatpush.msra.mxu0 0.0
    %156 = vmatpush.msra.mxu0 0.0
    %157 = vmatpush.msra.mxu0 0.0
    %158 = vmatpush.msra.mxu0 0.0
    %159 = vmatpush.msra.mxu0 0.0
    %160 = vmatpush.msra.mxu0 %v106
    %161 = vmatpush.msra.mxu0 %v105
    %162 = vmatpush.msra.mxu0 %v104
    %163 = vmatpush.msra.mxu0 %v103
    %164 = vmatmul.f32.gmra.mxu0 %v137
    %v165 = vpop.f32.mrf.mxu0
    %v166 = vadd.f32 %v118, %v165
    %167 = vmatmul.f32.gmra.mxu0 %v140
    %v168 = vpop.f32.mrf.mxu0
    %v169 = vadd.f32 %v123, %v168
    %170 = vmatmul.f32.gmra.mxu0 %v143
    %v171 = vpop.f32.mrf.mxu0
    %v172 = vadd.f32 %v128, %v171
    %173 = vmatmul.f32.gmra.mxu0 %v146
    %v174 = vpop.f32.mrf.mxu0
    %v175 = vadd.f32 %v133, %v174
    %176 = vdwg.mxu0
    %v177 = vmax.f32 %v166, 0.0
    %v178 = vmax.f32 %v169, 0.0
    %v179 = vmax.f32 %v172, 0.0
    %v180 = vmax.f32 %v175, 0.0
    %v181 = vld [vmem:[%s5] sm:$0xff]
    %v182 = vld [vmem:[%s5 + $0x8] sm:$0xff]
    %v183 = vld [vmem:[%s5 + $0x10] sm:$0xff]
    %v184 = vld [vmem:[%s5 + $0x18] sm:$0xff]
    %186 = vset.pattern.permute.xlu0 0
    %187 = vperm.xlu0 %186, %v181
    %v188 = vpop.permute.xlu0 %187
    %191 = vset.pattern.permute.xlu0 0
    %192 = vperm.xlu0 %191, %v182
    %v193 = vpop.permute.xlu0 %192
    %196 = vset.pattern.permute.xlu0 0
    %197 = vperm.xlu0 %196, %v183
    %v198 = vpop.permute.xlu0 %197
    %201 = vset.pattern.permute.xlu0 0
    %202 = vperm.xlu0 %201, %v184
    %v203 = vpop.permute.xlu0 %202
    %v205 = vmul.f32 %v177, %v188
    %v206 = vmul.f32 %v178, %v193
    %v207 = vmul.f32 %v179, %v198
    %v208 = vmul.f32 %v180, %v203
    %vm209 = vcmask 64512
    %v210 = vsel %vm209, %v205, 0.0
    %v211 = vsel %vm209, %v206, 0.0
    %v212 = vadd.f32 %v210, %v211
    %v213 = vsel %vm209, %v207, 0.0
    %v214 = vadd.f32 %v212, %v213
    %v215 = vsel %vm209, %v208, 0.0
    %v216 = vadd.f32 %v214, %v215
    %v217 = vrot.slane %v216, 4
    %v218 = vadd.f32 %v216, %v217
    %v219 = vrot.slane %v218, 2
    %v220 = vadd.f32 %v218, %v219
    %v221 = vrot.slane %v220, 1
    %v222 = vadd.f32 %v220, %v221
    %v223 = vld [vmem:[#allocation2] sm:$0x1]
    %225 = vset.pattern.permute.xlu0 0
    %226 = vperm.xlu0 %225, %v223
    %v227 = vpop.permute.xlu0 %226
    %v229 = vperm.slane %v227, 0
    %v230 = vadd.f32 %v222, %v229
    %vm231 = vcmask 57344
    %232 = vst.msk [vmem:[#allocation3] sm:$0x1] %vm231, %v230
    // Predicated region
    $region30: #{criticv_forward.1} parent=1 // pred_check
      _
    $region31: #{criticv_forward.1} parent=1 // pred_check_branch
      %234 = sbr.rel (0) target = $region33
    $region32: #{criticv_forward.1} parent=1 // pred_region
      %236 = vsyncadd [#allocation4], 0
      %s238 = sshll.u32 [#allocation3], 4
      %s239 = int_to_ptr.vmem [resolvable:$true] %s238
      %s240 = sshll.u32 %s7, 4
      %s241 = int_to_ptr.hbm [resolvable:$true] %s240
      %243 = dma.vmem_to_hbm [thread:$0]  %s239, 16, %s241, [#allocation4]
    $region33: #{criticv_forward.1} parent=1 // pred_fallthru
      _
    // Predicated region
    $region34: #{criticv_forward.1} parent=1 // pred_check
      _
    $region35: #{criticv_forward.1} parent=1 // pred_check_branch
      %245 = sbr.rel (0) target = $region37
    $region36: #{criticv_forward.1} parent=1 // pred_region
      %247 = dma.done [#allocation4], 16
    $region37: #{criticv_forward.1} parent=1 // pred_fallthru
      _
    %248 = vsyncpa [#allocation4], 1

</llo_original>
